<compile_context>
chip_gen: v5e
topology: v5e:2x2
jax: 0.10.0
libtpu: 0.0.40
codegen_flags: <defaults>
</compile_context>

<pallas_src>
import functools

import jax
import jax.numpy as jnp
from jax import lax
from jax.experimental import pallas as pl
from jax.experimental.pallas import tpu as pltpu

EPS = 1e-3


# ------------------------------ helpers ------------------------------------
def _round_up(x, m):
    return (x + m - 1) // m * m


def _num_tensorcores():
    """2 on megacore-style parts (v4/v5p/v7x), else 1.  Heuristic only."""
    try:
        kind = jax.devices()[0].device_kind.lower()
    except Exception:
        return 2
    return 2 if any(t in kind for t in ("v7", "v4", "v5p")) else 1


def _vmem_budget_bytes():
    """Block working-set budget (double buffering included): stay well under
    every generation's *default* scoped-VMEM limit (v5e: 16 MiB binds)."""
    cap = None
    try:
        cap = int(pltpu.get_tpu_info().vmem_capacity_bytes)
    except Exception:
        cap = None
    budget = 10 * 1024 * 1024
    if cap:
        budget = min(budget, cap // 4)
    return budget


def _pick_tm(m_rows, wo, n_batch, k4, cout, budget_bytes, n_cores,
             max_tile_m=None):
    """Largest row tile (divides m_rows, multiple of 8) fitting the VMEM
    budget; require >= n_cores total grid blocks only when >1 TC exists."""
    e = _round_up(max(wo, 1), 8)
    w_bytes = 4 * k4 * cout * 2 + cout * 4

    def fits(tm):
        slab = (tm + e) * k4 * 2          # one bf16 (ts, 4*Cin) slab
        outb = tm * cout * 2              # bf16 output block
        return 2 * (2 * slab + outb) + w_bytes <= budget_bytes

    cands = [d for d in range(8 * (m_rows // 8), 7, -8) if m_rows % d == 0]
    if m_rows not in cands:
        cands = [m_rows] + cands          # full-extent fallback (always legal)
    if max_tile_m is not None:
        cands = [t for t in cands if t <= max_tile_m] or [cands[-1]]
    fitting = [t for t in cands if fits(t)] or [cands[-1]]
    for t in fitting:
        if n_batch * (m_rows // t) >= max(1, n_cores):
            return t
    return fitting[0]


# ------------------------------ Pallas kernel ------------------------------
def _conv_bn_relu_kernel(s0_ref, s1_ref, w_ref, shift_ref, o_ref, *, wo, tm):
    # In-kernel "im2col": tap (dy, dx) of the equivalent stride-1 2x2 conv over
    # the space-to-depth input is rows [dy*wo, dy*wo + tm) of the dx-shifted
    # slab.  Four K=4*Cin matmuls accumulated in f32 on the MXU.
    acc = jnp.dot(s0_ref[0:tm, :], w_ref[0],
                  preferred_element_type=jnp.float32)
    acc += jnp.dot(s1_ref[0:tm, :], w_ref[1],
                   preferred_element_type=jnp.float32)
    acc += jnp.dot(s0_ref[wo:wo + tm, :], w_ref[2],
                   preferred_element_type=jnp.float32)
    acc += jnp.dot(s1_ref[wo:wo + tm, :], w_ref[3],
                   preferred_element_type=jnp.float32)
    y = jnp.maximum(acc + shift_ref[...], 0.0)     # folded BN shift + ReLU
    o_ref[...] = y.astype(o_ref.dtype)


# -------------------------- param preprocessing -----------------------------
def prepare_params(params):
    """Done once at param-load time (hoisted out of the per-call jitted path).
    Folds eval-mode BN + conv bias and lays the 3x3/stride-2 kernel out as the
    4 (dy, dx) weight blocks of the 2x2 conv over the space-to-depth input."""
    wt = params['conv']['w']                      # (Cout, Cin, 3, 3) torch
    bias = params['conv']['b']
    bn = params['bn']
    cout, cin = wt.shape[0], wt.shape[1]

    scale = bn['gamma'] / jnp.sqrt(bn['var'] + EPS)
    shift = bn['beta'] + (bias - bn['mean']) * scale

    w4 = jnp.zeros((4, 4 * cin, cout), jnp.float32)
    for dy in range(2):
        for dx in range(2):
            for rp in range(2):                   # row parity (phase)
                for cp in range(2):               # col parity (phase)
                    ky, kx = 2 * dy + rp, 2 * dx + cp
                    if ky < 3 and kx < 3:         # taps outside 3x3 stay zero
                        blk = jnp.transpose(wt[:, :, ky, kx])   # (Cin, Cout)
                        row0 = (rp * 2 + cp) * cin
                        w4 = w4.at[2 * dy + dx, row0:row0 + cin, :].set(blk)
    w4 = (w4 * scale[None, None, :]).astype(jnp.bfloat16)       # fold BN scale
    return {'w4': w4, 'shift': shift.reshape(1, cout).astype(jnp.float32)}


# ------------------------------ forward pass --------------------------------
def downsampler_block(x_nhwc, prepped, *, max_tile_m=None):
    """Conv2d(3x3, stride 2, pad 1, bias) + BatchNorm(eval) + ReLU. NHWC."""
    n, h, w, cin = x_nhwc.shape
    k4 = 4 * cin
    assert prepped['w4'].shape[1] == k4
    cout = prepped['w4'].shape[2]
    ho = (h - 1) // 2 + 1
    wo = (w - 1) // 2 + 1
    m_rows = ho * wo

    # Host prep: bf16 cast, conv zero-padding, space-to-depth(2).
    x_bf = x_nhwc.astype(jnp.bfloat16)
    xp = jnp.pad(x_bf, ((0, 0), (1, 2 * ho + 1 - h), (1, 2 * wo + 1 - w), (0, 0)))
    xs = xp.reshape(n, ho + 1, 2, wo + 1, 2, cin)
    xs = xs.transpose(0, 1, 3, 2, 4, 5).reshape(n, ho + 1, wo + 1, k4)

    # Two dx-shifted, width-flattened views (flat row = r*wo + c) so the kernel
    # only needs contiguous dy*wo row shifts: no in-kernel reshapes/gathers.
    a0 = xs[:, :, 0:wo, :].reshape(n, (ho + 1) * wo, k4)
    a1 = xs[:, :, 1:wo + 1, :].reshape(n, (ho + 1) * wo, k4)

    e = _round_up(wo, 8)
    tm = _pick_tm(m_rows, wo, n, k4, cout, _vmem_budget_bytes(),
                  _num_tensorcores(), max_tile_m)
    nb = m_rows // tm
    ts = tm + e

    # Per-block slabs with the tiny (<= e rows) boundary overlap duplicated so
    # each grid step sees one full-extent VMEM block (clean BlockSpec, always
    # legal shapes, auto double-buffered by the Pallas pipeline).
    pad_rows = (nb - 1) * tm + ts - (ho + 1) * wo            # == e - wo
    if pad_rows:
        a0 = jnp.pad(a0, ((0, 0), (0, pad_rows), (0, 0)))
        a1 = jnp.pad(a1, ((0, 0), (0, pad_rows), (0, 0)))
    s0 = jnp.stack([a0[:, i * tm:i * tm + ts, :] for i in range(nb)], axis=1)
    s1 = jnp.stack([a1[:, i * tm:i * tm + ts, :] for i in range(nb)], axis=1)

    kernel = functools.partial(_conv_bn_relu_kernel, wo=wo, tm=tm)
    out = pl.pallas_call(
        kernel,
        out_shape=jax.ShapeDtypeStruct((n, m_rows, cout), jnp.bfloat16),
        grid_spec=pltpu.PrefetchScalarGridSpec(
            num_scalar_prefetch=0,
            grid=(n, nb),
            in_specs=[
                pl.BlockSpec((None, None, ts, k4), lambda b, i: (b, i, 0, 0)),
                pl.BlockSpec((None, None, ts, k4), lambda b, i: (b, i, 0, 0)),
                pl.BlockSpec((4, k4, cout), lambda b, i: (0, 0, 0)),
                pl.BlockSpec((1, cout), lambda b, i: (0, 0)),
            ],
            out_specs=pl.BlockSpec((None, tm, cout), lambda b, i: (b, i, 0)),
        ),
        compiler_params=pltpu.CompilerParams(
            dimension_semantics=("parallel", "parallel")),
    )(s0, s1, prepped['w4'], prepped['shift'])
    return out.reshape(n, ho, wo, cout)


# ------------------------- deterministic parameters -------------------------
def init_params(key, ninput, noutput):
    k1, k2, k3, k4, k5, k6 = jax.random.split(key, 6)
    return {
        'conv': {'w': 0.1 * jax.random.normal(k1, (noutput, ninput, 3, 3),
                                              jnp.float32),
                 'b': 0.1 * jax.random.normal(k2, (noutput,), jnp.float32)},
        'bn': {'gamma': 1.0 + 0.1 * jax.random.normal(k3, (noutput,),
                                                      jnp.float32),
               'beta': 0.1 * jax.random.normal(k4, (noutput,), jnp.float32),
               'mean': 0.1 * jax.random.normal(k5, (noutput,), jnp.float32),
               'var': 0.5 + jax.random.uniform(k6, (noutput,), jnp.float32)},
    }


# -------------------------- pure-JAX reference (NCHW) -----------------------
def ref_downsampler(x_nchw, p):
    y = lax.conv_general_dilated(
        x_nchw, p['conv']['w'], (2, 2), padding=[(1, 1), (1, 1)],
        dimension_numbers=('NCHW', 'OIHW', 'NCHW'),
        precision=lax.Precision.HIGHEST)
    y = y + p['conv']['b'][None, :, None, None]
    s = p['bn']['gamma'] / jnp.sqrt(p['bn']['var'] + EPS)
    t = p['bn']['beta'] - p['bn']['mean'] * s
    y = y * s[None, :, None, None] + t[None, :, None, None]
    return jax.nn.relu(y)


def _run_and_check(x_nchw, params, prepped, tol, max_tile_m=None):
    x_nhwc = jnp.transpose(x_nchw, (0, 2, 3, 1))
    fwd = jax.jit(functools.partial(downsampler_block, max_tile_m=max_tile_m))
    y_nhwc = fwd(x_nhwc, prepped)
    jax.block_until_ready(y_nhwc)
    y = jnp.transpose(y_nhwc, (0, 3, 1, 2)).astype(jnp.float32)
    y_ref = jax.jit(ref_downsampler)(x_nchw, params)
    assert y.shape == y_ref.shape, (y.shape, y_ref.shape)
    max_err = float(jnp.max(jnp.abs(y - y_ref)))
    assert bool(jnp.allclose(y, y_ref, rtol=tol, atol=tol)), max_err
    return max_err


# ----------------------------------- main -----------------------------------
if __name__ == "__main__":
    key = jax.random.PRNGKey(0)
    kx, kp, kx2 = jax.random.split(key, 3)

    ninput, noutput = 16, 64            # e.g. ERFNet DownsamplerBlock(16, 64)
    N, H, W = 2, 16, 16
    params = init_params(kp, ninput, noutput)
    prepped = prepare_params(params)    # weight prep hoisted out of hot path

    x = jax.random.normal(kx, (N, ninput, H, W), jnp.float32)
    _run_and_check(x, params, prepped, tol=3e-2)

    # Multi-block row tiling path (forces 4 row blocks along M).
    _run_and_check(x, params, prepped, tol=3e-2, max_tile_m=16)

    # Odd spatial dims (asymmetric bottom/right conv padding), per review.
    x_odd = jax.random.normal(kx2, (N, ninput, 15, 15), jnp.float32)
    _run_and_check(x_odd, params, prepped, tol=3e-2)

    print("KERNEL_OK")
</pallas_src>

<mosaic_0001>
module attributes {stable_mosaic.version = 11 : i64} {
  func.func @_conv_bn_relu_kernel(%arg0: i32, %arg1: i32, %arg2: memref<1x1x72x64xbf16, #tpu.memory_space<vmem>>, %arg3: memref<1x1x72x64xbf16, #tpu.memory_space<vmem>>, %arg4: memref<4x64x64xbf16, #tpu.memory_space<vmem>>, %arg5: memref<1x64xf32, #tpu.memory_space<vmem>>, %arg6: memref<1x64x64xbf16, #tpu.memory_space<vmem>>) attributes {dimension_semantics = [#tpu.dimension_semantics<parallel>, #tpu.dimension_semantics<parallel>], iteration_bounds = array<i64: 2, 1>, scalar_prefetch = 0 : i64, scratch_operands = 0 : i64, tpu.core_type = #tpu.core_type<tc>, window_params = [{transform_indices = @transform_0, window_bounds = array<i64: 1, 1, 72, 64>}, {transform_indices = @transform_1, window_bounds = array<i64: 1, 1, 72, 64>}, {pipeline_mode = #tpu.pipeline_mode<synchronous>, transform_indices = @transform_2, window_bounds = array<i64: 4, 64, 64>}, {pipeline_mode = #tpu.pipeline_mode<synchronous>, transform_indices = @transform_3, window_bounds = array<i64: 1, 64>}, {transform_indices = @transform_4, window_bounds = array<i64: 1, 64, 64>}]} {
    %c0 = arith.constant 0 : index
    %c0_0 = arith.constant 0 : index
    %c0_1 = arith.constant 0 : index
    %c0_2 = arith.constant 0 : index
    %0 = vector.load %arg2[%c0, %c0_0, %c0_1, %c0_2] : memref<1x1x72x64xbf16, #tpu.memory_space<vmem>>, vector<1x1x64x64xbf16>
    %1 = vector.shape_cast %0 : vector<1x1x64x64xbf16> to vector<64x64xbf16>
    %c0_3 = arith.constant 0 : index
    %c0_4 = arith.constant 0 : index
    %c0_5 = arith.constant 0 : index
    %2 = vector.load %arg4[%c0_3, %c0_4, %c0_5] : memref<4x64x64xbf16, #tpu.memory_space<vmem>>, vector<1x64x64xbf16>
    %3 = vector.shape_cast %2 : vector<1x64x64xbf16> to vector<64x64xbf16>
    %cst = arith.constant dense<0.000000e+00> : vector<64x64xf32>
    %4 = tpu.matmul %1, %3, %cst {dimension_numbers = #tpu.dot_dimension_numbers<[1], [0], [0], [1], [0, 0, 1, 1], [], []>} : vector<64x64xbf16>, vector<64x64xbf16>, vector<64x64xf32> -> vector<64x64xf32>
    %c0_6 = arith.constant 0 : index
    %c0_7 = arith.constant 0 : index
    %c0_8 = arith.constant 0 : index
    %c0_9 = arith.constant 0 : index
    %5 = vector.load %arg3[%c0_6, %c0_7, %c0_8, %c0_9] : memref<1x1x72x64xbf16, #tpu.memory_space<vmem>>, vector<1x1x64x64xbf16>
    %6 = vector.shape_cast %5 : vector<1x1x64x64xbf16> to vector<64x64xbf16>
    %c1 = arith.constant 1 : index
    %c0_10 = arith.constant 0 : index
    %c0_11 = arith.constant 0 : index
    %7 = vector.load %arg4[%c1, %c0_10, %c0_11] : memref<4x64x64xbf16, #tpu.memory_space<vmem>>, vector<1x64x64xbf16>
    %8 = vector.shape_cast %7 : vector<1x64x64xbf16> to vector<64x64xbf16>
    %cst_12 = arith.constant dense<0.000000e+00> : vector<64x64xf32>
    %9 = tpu.matmul %6, %8, %cst_12 {dimension_numbers = #tpu.dot_dimension_numbers<[1], [0], [0], [1], [0, 0, 1, 1], [], []>} : vector<64x64xbf16>, vector<64x64xbf16>, vector<64x64xf32> -> vector<64x64xf32>
    %10 = arith.addf %4, %9 : vector<64x64xf32>
    %c0_13 = arith.constant 0 : index
    %c0_14 = arith.constant 0 : index
    %c8 = arith.constant 8 : index
    %c0_15 = arith.constant 0 : index
    %11 = vector.load %arg2[%c0_13, %c0_14, %c8, %c0_15] : memref<1x1x72x64xbf16, #tpu.memory_space<vmem>>, vector<1x1x64x64xbf16>
    %12 = vector.shape_cast %11 : vector<1x1x64x64xbf16> to vector<64x64xbf16>
    %c2 = arith.constant 2 : index
    %c0_16 = arith.constant 0 : index
    %c0_17 = arith.constant 0 : index
    %13 = vector.load %arg4[%c2, %c0_16, %c0_17] : memref<4x64x64xbf16, #tpu.memory_space<vmem>>, vector<1x64x64xbf16>
    %14 = vector.shape_cast %13 : vector<1x64x64xbf16> to vector<64x64xbf16>
    %cst_18 = arith.constant dense<0.000000e+00> : vector<64x64xf32>
    %15 = tpu.matmul %12, %14, %cst_18 {dimension_numbers = #tpu.dot_dimension_numbers<[1], [0], [0], [1], [0, 0, 1, 1], [], []>} : vector<64x64xbf16>, vector<64x64xbf16>, vector<64x64xf32> -> vector<64x64xf32>
    %16 = arith.addf %10, %15 : vector<64x64xf32>
    %c0_19 = arith.constant 0 : index
    %c0_20 = arith.constant 0 : index
    %c8_21 = arith.constant 8 : index
    %c0_22 = arith.constant 0 : index
    %17 = vector.load %arg3[%c0_19, %c0_20, %c8_21, %c0_22] : memref<1x1x72x64xbf16, #tpu.memory_space<vmem>>, vector<1x1x64x64xbf16>
    %18 = vector.shape_cast %17 : vector<1x1x64x64xbf16> to vector<64x64xbf16>
    %c3 = arith.constant 3 : index
    %c0_23 = arith.constant 0 : index
    %c0_24 = arith.constant 0 : index
    %19 = vector.load %arg4[%c3, %c0_23, %c0_24] : memref<4x64x64xbf16, #tpu.memory_space<vmem>>, vector<1x64x64xbf16>
    %20 = vector.shape_cast %19 : vector<1x64x64xbf16> to vector<64x64xbf16>
    %cst_25 = arith.constant dense<0.000000e+00> : vector<64x64xf32>
    %21 = tpu.matmul %18, %20, %cst_25 {dimension_numbers = #tpu.dot_dimension_numbers<[1], [0], [0], [1], [0, 0, 1, 1], [], []>} : vector<64x64xbf16>, vector<64x64xbf16>, vector<64x64xf32> -> vector<64x64xf32>
    %22 = arith.addf %16, %21 : vector<64x64xf32>
    %c0_26 = arith.constant 0 : index
    %c0_27 = arith.constant 0 : index
    %23 = vector.load %arg5[%c0_26, %c0_27] : memref<1x64xf32, #tpu.memory_space<vmem>>, vector<1x64xf32>
    %24 = vector.broadcast %23 : vector<1x64xf32> to vector<64x64xf32>
    %25 = arith.addf %22, %24 : vector<64x64xf32>
    %cst_28 = arith.constant 0.000000e+00 : f32
    %26 = vector.broadcast %cst_28 : f32 to vector<64x64xf32>
    %27 = arith.maximumf %25, %26 : vector<64x64xf32>
    %28 = arith.truncf %27 : vector<64x64xf32> to vector<64x64xbf16>
    %c0_29 = arith.constant 0 : index
    %c0_30 = arith.constant 0 : index
    %c0_31 = arith.constant 0 : index
    %29 = vector.load %arg6[%c0_29, %c0_30, %c0_31] : memref<1x64x64xbf16, #tpu.memory_space<vmem>>, vector<1x64x64xbf16>
    %30 = vector.shape_cast %29 : vector<1x64x64xbf16> to vector<64x64xbf16>
    %31 = vector.shape_cast %28 : vector<64x64xbf16> to vector<1x64x64xbf16>
    tpu.vector_store %arg6[%c0_29, %c0_30, %c0_31], %31 {strides = array<i32>} : memref<1x64x64xbf16, #tpu.memory_space<vmem>>, vector<1x64x64xbf16>,
    return
  }
  func.func @transform_0(%arg0: i32, %arg1: i32) -> (i32, i32, i32, i32) {
    %c0_i32 = arith.constant 0 : i32
    %c0_i32_0 = arith.constant 0 : i32
    %c0_i32_1 = arith.constant 0 : i32
    return %arg0, %arg1, %c0_i32, %c0_i32_0 : i32, i32, i32, i32
  }
  func.func @transform_1(%arg0: i32, %arg1: i32) -> (i32, i32, i32, i32) {
    %c0_i32 = arith.constant 0 : i32
    %c0_i32_0 = arith.constant 0 : i32
    %c0_i32_1 = arith.constant 0 : i32
    return %arg0, %arg1, %c0_i32, %c0_i32_0 : i32, i32, i32, i32
  }
  func.func @transform_2(%arg0: i32, %arg1: i32) -> (i32, i32, i32) {
    %c0_i32 = arith.constant 0 : i32
    %c0_i32_0 = arith.constant 0 : i32
    %c0_i32_1 = arith.constant 0 : i32
    %c0_i32_2 = arith.constant 0 : i32
    return %c0_i32, %c0_i32_0, %c0_i32_1 : i32, i32, i32
  }
  func.func @transform_3(%arg0: i32, %arg1: i32) -> (i32, i32) {
    %c0_i32 = arith.constant 0 : i32
    %c0_i32_0 = arith.constant 0 : i32
    %c0_i32_1 = arith.constant 0 : i32
    return %c0_i32, %c0_i32_0 : i32, i32
  }
  func.func @transform_4(%arg0: i32, %arg1: i32) -> (i32, i32, i32) {
    %c0_i32 = arith.constant 0 : i32
    %c0_i32_0 = arith.constant 0 : i32
    return %arg0, %arg1, %c0_i32 : i32, i32, i32
  }
}

</mosaic_0001>

<llo_original>
// kernel: downsampler_block.1
$region0: #{downsampler_block.1}
  #allocation0 [shape = 'u32[]', space=smem, size = 0x4, offset = 0x4, fixed_abs, tag = 'smem constant byte address 0x4 - core index']
  #allocation1 [shape = 'u32[72,128]{1,0:T(1,128)}', space=vmem, size = 0x9000, scoped, tag = 'internal scratch']
  %s0 = inlined_call_operand.vmem [shape: bf16[2,1,72,64], index: 0, kind: input, shape index: {}]
  %s1 = inlined_call_operand.vmem [shape: bf16[2,1,72,64], index: 1, kind: input, shape index: {}]
  %s2 = inlined_call_operand.vmem [shape: bf16[4,64,64], index: 2, kind: input, shape index: {}]
  %s3 = inlined_call_operand.vmem [shape: f32[1,64], index: 3, kind: input, shape index: {}]
  %s4 = inlined_call_operand.hbm [shape: bf16[2,64,64], index: 4, kind: output, shape index: {}]
  %s5 = sld [smem:[#allocation0]]
  $region49: #{downsampler_block.1} parent=0
    _
  %s7 = ssub.s32 1, %s5
  %s8 = scalar_select 0, %s7, %s5
  $region1: #{downsampler_block.1} parent=0
    #allocation2 [shape = 'u8[32768]{0}', space=vmem, size = 0x8000, scoped, tag = 'output window, operand 0']
    #allocation3 [shape = 's32[2]{0}', space=sflag, size = 0x8, scoped, tag = 'scoped memory for downsampler_block.1']
    %9 = vsyncpa [#allocation3], 0
    %s10 = scalar_lea.sflag [#allocation3], 1
    %11 = vsyncpa %s10, 0
    loop: start=0, step=1, limit=4
    $region2: #{downsampler_block.1} parent=1 // loop_pre_header
      _
    $region3: #{downsampler_block.1} parent=1 // loop_header
      %s13 = sphi 0, %s17
      %p14 = scmp.ge.s32.totalorder %s13, 4
      %s20 = sphi 0, %s32
      %s21 = sphi 0, %s28
      %s22 = sphi 0, %s20
      %s23 = sphi 0, %s21
      %s24 = sphi 0, %s22
      %s25 = sphi 0, %s23
      %s37 = sphi 0, %s39
      %s40 = sphi 0, %s37
      %s41 = sphi 0, %s40
      %s57 = sphi 0, %s41
      %s65 = sphi 0, %s67
      %s68 = sphi 0, %s65
      %s69 = sphi 0, %s68
      %s85 = sphi 0, %s69
      %s89 = sphi 0, %s89
      %s91 = sphi 0, %s89
      %s92 = sphi 0, %s91
      %s106 = sphi 0, %s92
      %s110 = sphi 0, %s110
      %s112 = sphi 0, %s110
      %s113 = sphi 0, %s112
      %s127 = sphi 0, %s113
      %s135 = sphi 0, %s137
      %s138 = sphi 0, %s135
      %s139 = sphi 0, %s138
      %s155 = sphi 0, %s139
    $region4: #{downsampler_block.1} parent=1 // loop_header_branch
      %16 = sbr.rel (%p14) target = $region8
    $region5: #{downsampler_block.1} parent=1 // loop_body
      %s18 = ssub.s32 %s13, 1
      %s19 = ssub.s32 %s13, 2
      %s26 = sadd.s32 1, %s21
      %p27 = scmp.ge.s32.totalorder %s26, 1
      %s28 = scalar_select %p27, 0, %s26
      %s29 = sadd.s32 1, %s20
      %s30 = scalar_select %p27, %s29, %s20
      %p31 = scmp.ge.s32.totalorder %s30, 2
      %s32 = scalar_select %p31, 0, %s30
      %s33 = ssub.s32 %s20, %s32
      %s34 = ssub.s32 %s21, %s28
      %s35 = sor.u32 %s33, %s34
      %p36 = scmp.eq.s32.totalorder %s35, 0
      %s38 = sadd.s32 %s37, 1
      %s39 = scalar_select %p36, %s37, %s38
      %p42 = pneg %p36
      %p43 = scmp.eq.s32.totalorder %s13, 1
      %p44 = por %p42, %p43
      %p45 = scmp.ne.s32.totalorder %s37, %s40
      %p46 = scmp.eq.s32.totalorder %s13, 0
      %p47 = por %p45, %p46
      %p48 = scmp.ne.s32.totalorder %s37, %s40
      %p49 = scmp.eq.s32.totalorder %s18, 1
      %p50 = por %p48, %p49
      %p51 = scmp.ne.s32.totalorder %s40, %s41
      %p52 = scmp.eq.s32.totalorder %s18, 0
      %p53 = por %p51, %p52
      %p54 = scmp.ne.s32.totalorder %s40, %s41
      %p55 = scmp.eq.s32.totalorder %s19, 1
      %p56 = por %p54, %p55
      %p58 = scmp.ne.s32.totalorder %s41, %s57
      %p59 = scmp.eq.s32.totalorder %s19, 0
      %p60 = por %p58, %p59
      %s61 = ssub.s32 %s20, %s32
      %s62 = ssub.s32 %s21, %s28
      %s63 = sor.u32 %s61, %s62
      %p64 = scmp.eq.s32.totalorder %s63, 0
      %s66 = sadd.s32 %s65, 1
      %s67 = scalar_select %p64, %s65, %s66
      %p70 = pneg %p64
      %p71 = scmp.eq.s32.totalorder %s13, 1
      %p72 = por %p70, %p71
      %p73 = scmp.ne.s32.totalorder %s65, %s68
      %p74 = scmp.eq.s32.totalorder %s13, 0
      %p75 = por %p73, %p74
      %p76 = scmp.ne.s32.totalorder %s65, %s68
      %p77 = scmp.eq.s32.totalorder %s18, 1
      %p78 = por %p76, %p77
      %p79 = scmp.ne.s32.totalorder %s68, %s69
      %p80 = scmp.eq.s32.totalorder %s18, 0
      %p81 = por %p79, %p80
      %p82 = scmp.ne.s32.totalorder %s68, %s69
      %p83 = scmp.eq.s32.totalorder %s19, 1
      %p84 = por %p82, %p83
      %p86 = scmp.ne.s32.totalorder %s69, %s85
      %p87 = scmp.eq.s32.totalorder %s19, 0
      %p88 = por %p86, %p87
      %s90 = sadd.s32 %s89, 1
      %p93 = scmp.eq.s32.totalorder %s13, 1
      %p94 = scmp.ne.s32.totalorder %s89, %s91
      %p95 = scmp.eq.s32.totalorder %s13, 0
      %p96 = por %p94, %p95
      %p97 = scmp.ne.s32.totalorder %s89, %s91
      %p98 = scmp.eq.s32.totalorder %s18, 1
      %p99 = por %p97, %p98
      %p100 = scmp.ne.s32.totalorder %s91, %s92
      %p101 = scmp.eq.s32.totalorder %s18, 0
      %p102 = por %p100, %p101
      %p103 = scmp.ne.s32.totalorder %s91, %s92
      %p104 = scmp.eq.s32.totalorder %s19, 1
      %p105 = por %p103, %p104
      %p107 = scmp.ne.s32.totalorder %s92, %s106
      %p108 = scmp.eq.s32.totalorder %s19, 0
      %p109 = por %p107, %p108
      %s111 = sadd.s32 %s110, 1
      %p114 = scmp.eq.s32.totalorder %s13, 1
      %p115 = scmp.ne.s32.totalorder %s110, %s112
      %p116 = scmp.eq.s32.totalorder %s13, 0
      %p117 = por %p115, %p116
      %p118 = scmp.ne.s32.totalorder %s110, %s112
      %p119 = scmp.eq.s32.totalorder %s18, 1
      %p120 = por %p118, %p119
      %p121 = scmp.ne.s32.totalorder %s112, %s113
      %p122 = scmp.eq.s32.totalorder %s18, 0
      %p123 = por %p121, %p122
      %p124 = scmp.ne.s32.totalorder %s112, %s113
      %p125 = scmp.eq.s32.totalorder %s19, 1
      %p126 = por %p124, %p125
      %p128 = scmp.ne.s32.totalorder %s113, %s127
      %p129 = scmp.eq.s32.totalorder %s19, 0
      %p130 = por %p128, %p129
      %s131 = ssub.s32 %s20, %s32
      %s132 = ssub.s32 %s21, %s28
      %s133 = sor.u32 %s131, %s132
      %p134 = scmp.eq.s32.totalorder %s133, 0
      %s136 = sadd.s32 %s135, 1
      %s137 = scalar_select %p134, %s135, %s136
      %p140 = pneg %p134
      %p141 = scmp.eq.s32.totalorder %s13, 1
      %p142 = por %p140, %p141
      %p143 = scmp.ne.s32.totalorder %s135, %s138
      %p144 = scmp.eq.s32.totalorder %s13, 0
      %p145 = por %p143, %p144
      %p146 = scmp.ne.s32.totalorder %s135, %s138
      %p147 = scmp.eq.s32.totalorder %s18, 1
      %p148 = por %p146, %p147
      %p149 = scmp.ne.s32.totalorder %s138, %s139
      %p150 = scmp.eq.s32.totalorder %s18, 0
      %p151 = por %p149, %p150
      %p152 = scmp.ne.s32.totalorder %s138, %s139
      %p153 = scmp.eq.s32.totalorder %s19, 1
      %p154 = por %p152, %p153
      %p156 = scmp.ne.s32.totalorder %s139, %s155
      %p157 = scmp.eq.s32.totalorder %s19, 0
      %p158 = por %p156, %p157
      %p159 = scmp.le.s32.totalorder 1, %s13
      %p160 = scmp.lt.s32.totalorder %s13, 3
      %p161 = pnand %p159, %p160
      %p162 = pneg %p161
      // Predicated region
      $region9: #{downsampler_block.1} parent=5 // pred_check
        _
      $region10: #{downsampler_block.1} parent=5 // pred_check_branch
        %164 = sbr.rel (%p161) target = $region12
      $region11: #{downsampler_block.1} parent=5 // pred_region
        %s165 = ssub.s32 %s13, 1
        // Predicated region
        $region13: #{downsampler_block.1} parent=11 // pred_check
          %p166 = pneg %p102
        $region14: #{downsampler_block.1} parent=11 // pred_check_branch
          %168 = sbr.rel (%p166) target = $region16
        $region15: #{downsampler_block.1} parent=11 // pred_region
          _
        $region16: #{downsampler_block.1} parent=11 // pred_fallthru
          _
        // Predicated region
        $region17: #{downsampler_block.1} parent=11 // pred_check
          %p169 = pneg %p123
        $region18: #{downsampler_block.1} parent=11 // pred_check_branch
          %171 = sbr.rel (%p169) target = $region20
        $region19: #{downsampler_block.1} parent=11 // pred_region
          _
        $region20: #{downsampler_block.1} parent=11 // pred_fallthru
          _
      $region12: #{downsampler_block.1} parent=5 // pred_fallthru
        _
      %p172 = scmp.lt.s32.totalorder %s13, 2
      // Predicated region
      $region21: #{downsampler_block.1} parent=5 // pred_check
        %p173 = pneg %p172
      $region22: #{downsampler_block.1} parent=5 // pred_check_branch
        %175 = sbr.rel (%p173) target = $region24
      $region23: #{downsampler_block.1} parent=5 // pred_region
        // Predicated region
        $region25: #{downsampler_block.1} parent=23 // pred_check
          %p176 = pneg %p47
        $region26: #{downsampler_block.1} parent=23 // pred_check_branch
          %178 = sbr.rel (%p176) target = $region28
        $region27: #{downsampler_block.1} parent=23 // pred_region
          %p179 = scmp.lt.s32.totalorder %s20, 1
          %s180 = scalar_select %p179, %s20, 1
          %p181 = scmp.lt.s32.totalorder %s21, 0
          %s182 = scalar_select %p181, %s21, 0
          %s183 = smul.addr %s182, 9
          %s184 = smul.addr %s180, 9
          %s185 = sadd.s32 %s183, %s184
          %s186 = smul.addr %s185, 4
          %s187 = scalar_lea.vmem %s0, %s186
        $region28: #{downsampler_block.1} parent=23 // pred_fallthru
          _
        // Predicated region
        $region29: #{downsampler_block.1} parent=23 // pred_check
          %p188 = pneg %p75
        $region30: #{downsampler_block.1} parent=23 // pred_check_branch
          %190 = sbr.rel (%p188) target = $region32
        $region31: #{downsampler_block.1} parent=23 // pred_region
          %p191 = scmp.lt.s32.totalorder %s20, 1
          %s192 = scalar_select %p191, %s20, 1
          %p193 = scmp.lt.s32.totalorder %s21, 0
          %s194 = scalar_select %p193, %s21, 0
          %s195 = smul.addr %s194, 9
          %s196 = smul.addr %s192, 9
          %s197 = sadd.s32 %s195, %s196
          %s198 = smul.addr %s197, 4
          %s199 = scalar_lea.vmem %s1, %s198
        $region32: #{downsampler_block.1} parent=23 // pred_fallthru
          _
      $region24: #{downsampler_block.1} parent=5 // pred_fallthru
        _
      %p200 = scmp.le.s32.totalorder 1, %s13
      %p201 = scmp.lt.s32.totalorder %s13, 3
      %p202 = pnand %p200, %p201
      %p203 = pneg %p202
      // Predicated region
      $region33: #{downsampler_block.1} parent=5 // pred_check
        _
      $region34: #{downsampler_block.1} parent=5 // pred_check_branch
        %205 = sbr.rel (%p202) target = $region36
      $region35: #{downsampler_block.1} parent=5 // pred_region
        %s206 = ssub.s32 %s13, 1
        %p207 = scmp.lt.s32.totalorder %s22, 1
        %s208 = scalar_select %p207, %s22, 1
        %p209 = scmp.lt.s32.totalorder %s23, 0
        %s210 = scalar_select %p209, %s23, 0
        %s211 = smul.addr %s210, 9
        %s212 = smul.addr %s208, 9
        %s213 = sadd.s32 %s211, %s212
        %s214 = smul.addr %s213, 4
        %s215 = scalar_lea.vmem %s0, %s214
        %p216 = pneg %p53
        %p217 = pneg %p50
        %p218 = scmp.lt.s32.totalorder %s22, 1
        %s219 = scalar_select %p218, %s22, 1
        %p220 = scmp.lt.s32.totalorder %s23, 0
        %s221 = scalar_select %p220, %s23, 0
        %s222 = smul.addr %s221, 9
        %s223 = smul.addr %s219, 9
        %s224 = sadd.s32 %s222, %s223
        %s225 = smul.addr %s224, 4
        %s226 = scalar_lea.vmem %s1, %s225
        %p227 = pneg %p81
        %p228 = pneg %p78
        %p229 = pneg %p102
        %p230 = pneg %p99
        %p231 = pneg %p123
        %p232 = pneg %p120
        %p233 = pneg %p151
        %p234 = pneg %p148
        %s235 = sand.u32 %s138, 1
        %s236 = scalar_lea.sflag [#allocation3], %s235
        %s237 = sand.u32 %s138, 1
        %s238 = smul.addr %s237, 32
        %s239 = scalar_lea.vmem [#allocation2], %s238
        %p240 = scmp.lt.s32.totalorder %s22, 1
        %s241 = scalar_select %p240, %s22, 1
        %p242 = scmp.lt.s32.totalorder %s23, 0
        %s243 = scalar_select %p242, %s23, 0
        %s244 = smul.addr %s243, 9
        %s245 = smul.addr %s241, 9
        %s246 = sadd.s32 %s244, %s245
        %s247 = smul.addr %s246, 4
        %s248 = scalar_lea.vmem %s0, %s247
        %p249 = scmp.lt.s32.totalorder %s22, 1
        %s250 = scalar_select %p249, %s22, 1
        %p251 = scmp.lt.s32.totalorder %s23, 0
        %s252 = scalar_select %p251, %s23, 0
        %s253 = smul.addr %s252, 9
        %s254 = smul.addr %s250, 9
        %s255 = sadd.s32 %s253, %s254
        %s256 = smul.addr %s255, 4
        %s257 = scalar_lea.vmem %s1, %s256
        %s258 = smul.u32 8, %s23
        %v260 = vld [vmem:[%s248] sm:$0xf]
        %v261 = vld [vmem:[%s248 + $0x4] sm:$0xf]
        %v262 = vld [vmem:[%s248 + $0x8] sm:$0xf]
        %v263 = vld [vmem:[%s248 + $0xc] sm:$0xf]
        %v264 = vld [vmem:[%s248 + $0x10] sm:$0xf]
        %v265 = vld [vmem:[%s248 + $0x14] sm:$0xf]
        %v266 = vld [vmem:[%s248 + $0x18] sm:$0xf]
        %v267 = vld [vmem:[%s248 + $0x1c] sm:$0xf]
        %v268 = vld [vmem:[%s2] sm:$0xf]
        %v269 = vld [vmem:[%s2 + $0x4] sm:$0xf]
        %v270 = vld [vmem:[%s2 + $0x8] sm:$0xf]
        %v271 = vld [vmem:[%s2 + $0xc] sm:$0xf]
        %v272 = vld [vmem:[%s2 + $0x10] sm:$0xf]
        %v273 = vld [vmem:[%s2 + $0x14] sm:$0xf]
        %v274 = vld [vmem:[%s2 + $0x18] sm:$0xf]
        %v275 = vld [vmem:[%s2 + $0x1c] sm:$0xf]
        %v276 = vld [vmem:[%s257] sm:$0xf]
        %v277 = vld [vmem:[%s257 + $0x4] sm:$0xf]
        %v278 = vld [vmem:[%s257 + $0x8] sm:$0xf]
        %v279 = vld [vmem:[%s257 + $0xc] sm:$0xf]
        %v280 = vld [vmem:[%s257 + $0x10] sm:$0xf]
        %v281 = vld [vmem:[%s257 + $0x14] sm:$0xf]
        %v282 = vld [vmem:[%s257 + $0x18] sm:$0xf]
        %v283 = vld [vmem:[%s257 + $0x1c] sm:$0xf]
        %s284 = scalar_lea.vmem %s2, 32
        %v285 = vld [vmem:[%s284] sm:$0xf]
        %v286 = vld [vmem:[%s284 + $0x4] sm:$0xf]
        %v287 = vld [vmem:[%s284 + $0x8] sm:$0xf]
        %v288 = vld [vmem:[%s284 + $0xc] sm:$0xf]
        %v289 = vld [vmem:[%s284 + $0x10] sm:$0xf]
        %v290 = vld [vmem:[%s284 + $0x14] sm:$0xf]
        %v291 = vld [vmem:[%s284 + $0x18] sm:$0xf]
        %v292 = vld [vmem:[%s284 + $0x1c] sm:$0xf]
        %v301 = vunpack.c.l.b16 %v276
        %v302 = vunpack.c.l.b16 %v277
        %v303 = vunpack.c.l.b16 %v278
        %v304 = vunpack.c.l.b16 %v279
        %v305 = vunpack.c.l.b16 %v280
        %v306 = vunpack.c.l.b16 %v281
        %v307 = vunpack.c.l.b16 %v282
        %v308 = vunpack.c.l.b16 %v283
        %v309 = vpack.c.b16 %v302, %v301
        %v310 = vpack.c.b16 %v304, %v303
        %v311 = vpack.c.b16 %v306, %v305
        %v312 = vpack.c.b16 %v308, %v307
        %v321 = vunpack.c.l.b16 %v285
        %v322 = vunpack.c.l.b16 %v286
        %v323 = vunpack.c.l.b16 %v287
        %v324 = vunpack.c.l.b16 %v288
        %v325 = vunpack.c.l.b16 %v289
        %v326 = vunpack.c.l.b16 %v290
        %v327 = vunpack.c.l.b16 %v291
        %v328 = vunpack.c.l.b16 %v292
        %v329 = vpack.c.b16 %v322, %v321
        %v330 = vpack.c.b16 %v324, %v323
        %v331 = vpack.c.b16 %v326, %v325
        %v332 = vpack.c.b16 %v328, %v327
        %vm337 = vcmask 523264
        %v339 = vsel %vm337, %v309, 0
        %v342 = vsel %vm337, %v310, 0
        %v345 = vsel %vm337, %v311, 0
        %v348 = vsel %vm337, %v312, 0
        %350 = vmatpush.bf16.msra.mxu0 0
        %351 = vmatpush.bf16.msra.mxu0 0
        %352 = vmatpush.bf16.msra.mxu0 0
        %353 = vmatpush.bf16.msra.mxu0 0
        %354 = vmatpush.bf16.msra.mxu0 %v332
        %355 = vmatpush.bf16.msra.mxu0 %v331
        %356 = vmatpush.bf16.msra.mxu0 %v330
        %357 = vmatpush.bf16.msra.mxu0 %v329
        %358 = vmatmul.bf16.gmra.mxu0 %v339
        %v359 = vpop.f32.mrf.mxu0
        %v360 = vadd.f32 0.0, %v359
        %v361 = vpop.f32.mrf.mxu0
        %v362 = vadd.f32 0.0, %v361
        %363 = vmatmul.bf16.gmra.mxu0 %v342
        %v364 = vpop.f32.mrf.mxu0
        %v365 = vadd.f32 0.0, %v364
        %v366 = vpop.f32.mrf.mxu0
        %v367 = vadd.f32 0.0, %v366
        %368 = vmatmul.bf16.gmra.mxu0 %v345
        %v369 = vpop.f32.mrf.mxu0
        %v370 = vadd.f32 0.0, %v369
        %v371 = vpop.f32.mrf.mxu0
        %v372 = vadd.f32 0.0, %v371
        %373 = vmatmul.bf16.gmra.mxu0 %v348
        %v374 = vpop.f32.mrf.mxu0
        %v375 = vadd.f32 0.0, %v374
        %v376 = vpop.f32.mrf.mxu0
        %v377 = vadd.f32 0.0, %v376
        %378 = vdwg.mxu0
        %v387 = vunpack.c.l.b16 %v260
        %v388 = vunpack.c.l.b16 %v261
        %v389 = vunpack.c.l.b16 %v262
        %v390 = vunpack.c.l.b16 %v263
        %v391 = vunpack.c.l.b16 %v264
        %v392 = vunpack.c.l.b16 %v265
        %v393 = vunpack.c.l.b16 %v266
        %v394 = vunpack.c.l.b16 %v267
        %v395 = vpack.c.b16 %v388, %v387
        %v396 = vpack.c.b16 %v390, %v389
        %v397 = vpack.c.b16 %v392, %v391
        %v398 = vpack.c.b16 %v394, %v393
        %v407 = vunpack.c.l.b16 %v268
        %v408 = vunpack.c.l.b16 %v269
        %v409 = vunpack.c.l.b16 %v270
        %v410 = vunpack.c.l.b16 %v271
        %v411 = vunpack.c.l.b16 %v272
        %v412 = vunpack.c.l.b16 %v273
        %v413 = vunpack.c.l.b16 %v274
        %v414 = vunpack.c.l.b16 %v275
        %v415 = vpack.c.b16 %v408, %v407
        %v416 = vpack.c.b16 %v410, %v409
        %v417 = vpack.c.b16 %v412, %v411
        %v418 = vpack.c.b16 %v414, %v413
        %v424 = vsel %vm337, %v395, 0
        %v427 = vsel %vm337, %v396, 0
        %v430 = vsel %vm337, %v397, 0
        %v433 = vsel %vm337, %v398, 0
        %435 = vmatpush.bf16.msra.mxu0 0
        %436 = vmatpush.bf16.msra.mxu0 0
        %437 = vmatpush.bf16.msra.mxu0 0
        %438 = vmatpush.bf16.msra.mxu0 0
        %439 = vmatpush.bf16.msra.mxu0 %v418
        %440 = vmatpush.bf16.msra.mxu0 %v417
        %441 = vmatpush.bf16.msra.mxu0 %v416
        %442 = vmatpush.bf16.msra.mxu0 %v415
        %443 = vmatmul.bf16.gmra.mxu0 %v424
        %v444 = vpop.f32.mrf.mxu0
        %v445 = vadd.f32 %v360, %v444
        %v446 = vpop.f32.mrf.mxu0
        %v447 = vadd.f32 %v362, %v446
        %448 = vmatmul.bf16.gmra.mxu0 %v427
        %v449 = vpop.f32.mrf.mxu0
        %v450 = vadd.f32 %v365, %v449
        %v451 = vpop.f32.mrf.mxu0
        %v452 = vadd.f32 %v367, %v451
        %453 = vmatmul.bf16.gmra.mxu0 %v430
        %v454 = vpop.f32.mrf.mxu0
        %v455 = vadd.f32 %v370, %v454
        %v456 = vpop.f32.mrf.mxu0
        %v457 = vadd.f32 %v372, %v456
        %458 = vmatmul.bf16.gmra.mxu0 %v433
        %v459 = vpop.f32.mrf.mxu0
        %v460 = vadd.f32 %v375, %v459
        %v461 = vpop.f32.mrf.mxu0
        %v462 = vadd.f32 %v377, %v461
        %463 = vdwg.mxu0
        %v464 = vld [vmem:[%s248 + $0x4] sm:$0xf]
        %v465 = vld [vmem:[%s248 + $0x8] sm:$0xf]
        %v466 = vld [vmem:[%s248 + $0xc] sm:$0xf]
        %v467 = vld [vmem:[%s248 + $0x10] sm:$0xf]
        %v468 = vld [vmem:[%s248 + $0x14] sm:$0xf]
        %v469 = vld [vmem:[%s248 + $0x18] sm:$0xf]
        %v470 = vld [vmem:[%s248 + $0x1c] sm:$0xf]
        %v471 = vld [vmem:[%s248 + $0x20] sm:$0xf]
        %s472 = scalar_lea.vmem %s2, 64
        %v473 = vld [vmem:[%s472] sm:$0xf]
        %v474 = vld [vmem:[%s472 + $0x4] sm:$0xf]
        %v475 = vld [vmem:[%s472 + $0x8] sm:$0xf]
        %v476 = vld [vmem:[%s472 + $0xc] sm:$0xf]
        %v477 = vld [vmem:[%s472 + $0x10] sm:$0xf]
        %v478 = vld [vmem:[%s472 + $0x14] sm:$0xf]
        %v479 = vld [vmem:[%s472 + $0x18] sm:$0xf]
        %v480 = vld [vmem:[%s472 + $0x1c] sm:$0xf]
        %v489 = vunpack.c.l.b16 %v464
        %v490 = vunpack.c.l.b16 %v465
        %v491 = vunpack.c.l.b16 %v466
        %v492 = vunpack.c.l.b16 %v467
        %v493 = vunpack.c.l.b16 %v468
        %v494 = vunpack.c.l.b16 %v469
        %v495 = vunpack.c.l.b16 %v470
        %v496 = vunpack.c.l.b16 %v471
        %v497 = vpack.c.b16 %v490, %v489
        %v498 = vpack.c.b16 %v492, %v491
        %v499 = vpack.c.b16 %v494, %v493
        %v500 = vpack.c.b16 %v496, %v495
        %v509 = vunpack.c.l.b16 %v473
        %v510 = vunpack.c.l.b16 %v474
        %v511 = vunpack.c.l.b16 %v475
        %v512 = vunpack.c.l.b16 %v476
        %v513 = vunpack.c.l.b16 %v477
        %v514 = vunpack.c.l.b16 %v478
        %v515 = vunpack.c.l.b16 %v479
        %v516 = vunpack.c.l.b16 %v480
        %v517 = vpack.c.b16 %v510, %v509
        %v518 = vpack.c.b16 %v512, %v511
        %v519 = vpack.c.b16 %v514, %v513
        %v520 = vpack.c.b16 %v516, %v515
        %v526 = vsel %vm337, %v497, 0
        %v529 = vsel %vm337, %v498, 0
        %v532 = vsel %vm337, %v499, 0
        %v535 = vsel %vm337, %v500, 0
        %537 = vmatpush.bf16.msra.mxu0 0
        %538 = vmatpush.bf16.msra.mxu0 0
        %539 = vmatpush.bf16.msra.mxu0 0
        %540 = vmatpush.bf16.msra.mxu0 0
        %541 = vmatpush.bf16.msra.mxu0 %v520
        %542 = vmatpush.bf16.msra.mxu0 %v519
        %543 = vmatpush.bf16.msra.mxu0 %v518
        %544 = vmatpush.bf16.msra.mxu0 %v517
        %545 = vmatmul.bf16.gmra.mxu0 %v526
        %v546 = vpop.f32.mrf.mxu0
        %v547 = vadd.f32 0.0, %v546
        %v548 = vpop.f32.mrf.mxu0
        %v549 = vadd.f32 0.0, %v548
        %550 = vmatmul.bf16.gmra.mxu0 %v529
        %v551 = vpop.f32.mrf.mxu0
        %v552 = vadd.f32 0.0, %v551
        %v553 = vpop.f32.mrf.mxu0
        %v554 = vadd.f32 0.0, %v553
        %555 = vmatmul.bf16.gmra.mxu0 %v532
        %v556 = vpop.f32.mrf.mxu0
        %v557 = vadd.f32 0.0, %v556
        %v558 = vpop.f32.mrf.mxu0
        %v559 = vadd.f32 0.0, %v558
        %560 = vmatmul.bf16.gmra.mxu0 %v535
        %v561 = vpop.f32.mrf.mxu0
        %v562 = vadd.f32 0.0, %v561
        %v563 = vpop.f32.mrf.mxu0
        %v564 = vadd.f32 0.0, %v563
        %565 = vdwg.mxu0
        %v566 = vadd.f32 %v445, %v547
        %v567 = vadd.f32 %v447, %v549
        %v568 = vadd.f32 %v450, %v552
        %v569 = vadd.f32 %v452, %v554
        %v570 = vadd.f32 %v455, %v557
        %v571 = vadd.f32 %v457, %v559
        %v572 = vadd.f32 %v460, %v562
        %v573 = vadd.f32 %v462, %v564
        %v574 = vld [vmem:[%s257 + $0x4] sm:$0xf]
        %v575 = vld [vmem:[%s257 + $0x8] sm:$0xf]
        %v576 = vld [vmem:[%s257 + $0xc] sm:$0xf]
        %v577 = vld [vmem:[%s257 + $0x10] sm:$0xf]
        %v578 = vld [vmem:[%s257 + $0x14] sm:$0xf]
        %v579 = vld [vmem:[%s257 + $0x18] sm:$0xf]
        %v580 = vld [vmem:[%s257 + $0x1c] sm:$0xf]
        %v581 = vld [vmem:[%s257 + $0x20] sm:$0xf]
        %s582 = scalar_lea.vmem %s2, 96
        %v583 = vld [vmem:[%s582] sm:$0xf]
        %v584 = vld [vmem:[%s582 + $0x4] sm:$0xf]
        %v585 = vld [vmem:[%s582 + $0x8] sm:$0xf]
        %v586 = vld [vmem:[%s582 + $0xc] sm:$0xf]
        %v587 = vld [vmem:[%s582 + $0x10] sm:$0xf]
        %v588 = vld [vmem:[%s582 + $0x14] sm:$0xf]
        %v589 = vld [vmem:[%s582 + $0x18] sm:$0xf]
        %v590 = vld [vmem:[%s582 + $0x1c] sm:$0xf]
        %v599 = vunpack.c.l.b16 %v574
        %v600 = vunpack.c.l.b16 %v575
        %v601 = vunpack.c.l.b16 %v576
        %v602 = vunpack.c.l.b16 %v577
        %v603 = vunpack.c.l.b16 %v578
        %v604 = vunpack.c.l.b16 %v579
        %v605 = vunpack.c.l.b16 %v580
        %v606 = vunpack.c.l.b16 %v581
        %v607 = vpack.c.b16 %v600, %v599
        %v608 = vpack.c.b16 %v602, %v601
        %v609 = vpack.c.b16 %v604, %v603
        %v610 = vpack.c.b16 %v606, %v605
        %v619 = vunpack.c.l.b16 %v583
        %v620 = vunpack.c.l.b16 %v584
        %v621 = vunpack.c.l.b16 %v585
        %v622 = vunpack.c.l.b16 %v586
        %v623 = vunpack.c.l.b16 %v587
        %v624 = vunpack.c.l.b16 %v588
        %v625 = vunpack.c.l.b16 %v589
        %v626 = vunpack.c.l.b16 %v590
        %v627 = vpack.c.b16 %v620, %v619
        %v628 = vpack.c.b16 %v622, %v621
        %v629 = vpack.c.b16 %v624, %v623
        %v630 = vpack.c.b16 %v626, %v625
        %v636 = vsel %vm337, %v607, 0
        %v639 = vsel %vm337, %v608, 0
        %v642 = vsel %vm337, %v609, 0
        %v645 = vsel %vm337, %v610, 0
        %647 = vmatpush.bf16.msra.mxu0 0
        %648 = vmatpush.bf16.msra.mxu0 0
        %649 = vmatpush.bf16.msra.mxu0 0
        %650 = vmatpush.bf16.msra.mxu0 0
        %651 = vmatpush.bf16.msra.mxu0 %v630
        %652 = vmatpush.bf16.msra.mxu0 %v629
        %653 = vmatpush.bf16.msra.mxu0 %v628
        %654 = vmatpush.bf16.msra.mxu0 %v627
        %655 = vmatmul.bf16.gmra.mxu0 %v636
        %v656 = vpop.f32.mrf.mxu0
        %v657 = vadd.f32 0.0, %v656
        %v658 = vpop.f32.mrf.mxu0
        %v659 = vadd.f32 0.0, %v658
        %660 = vmatmul.bf16.gmra.mxu0 %v639
        %v661 = vpop.f32.mrf.mxu0
        %v662 = vadd.f32 0.0, %v661
        %v663 = vpop.f32.mrf.mxu0
        %v664 = vadd.f32 0.0, %v663
        %665 = vmatmul.bf16.gmra.mxu0 %v642
        %v666 = vpop.f32.mrf.mxu0
        %v667 = vadd.f32 0.0, %v666
        %v668 = vpop.f32.mrf.mxu0
        %v669 = vadd.f32 0.0, %v668
        %670 = vmatmul.bf16.gmra.mxu0 %v645
        %v671 = vpop.f32.mrf.mxu0
        %v672 = vadd.f32 0.0, %v671
        %v673 = vpop.f32.mrf.mxu0
        %v674 = vadd.f32 0.0, %v673
        %675 = vdwg.mxu0
        %v676 = vadd.f32 %v566, %v657
        %v677 = vadd.f32 %v567, %v659
        %v678 = vadd.f32 %v568, %v662
        %v679 = vadd.f32 %v569, %v664
        %v680 = vadd.f32 %v570, %v667
        %v681 = vadd.f32 %v571, %v669
        %v682 = vadd.f32 %v572, %v672
        %v683 = vadd.f32 %v573, %v674
        %v684 = vld [vmem:[%s3] sm:$0x1]
        %v686 = vperm.slane %v684, 0
        %v688 = vadd.f32 %v676, %v686
        %v689 = vadd.f32 %v677, %v686
        %v690 = vadd.f32 %v678, %v686
        %v691 = vadd.f32 %v679, %v686
        %v692 = vadd.f32 %v680, %v686
        %v693 = vadd.f32 %v681, %v686
        %v694 = vadd.f32 %v682, %v686
        %v695 = vadd.f32 %v683, %v686
        %v696 = vmax.f32 %v688, 0.0
        %v697 = vmax.f32 %v689, 0.0
        %v698 = vmax.f32 %v690, 0.0
        %v699 = vmax.f32 %v691, 0.0
        %v700 = vmax.f32 %v692, 0.0
        %v701 = vmax.f32 %v693, 0.0
        %v702 = vmax.f32 %v694, 0.0
        %v703 = vmax.f32 %v695, 0.0
        %v704 = vpack.c.bf16 %v696, %v696
        %v705 = vpack.c.bf16 %v697, %v697
        %v706 = vpack.c.bf16 %v698, %v698
        %v707 = vpack.c.bf16 %v699, %v699
        %v708 = vpack.c.bf16 %v700, %v700
        %v709 = vpack.c.bf16 %v701, %v701
        %v710 = vpack.c.bf16 %v702, %v702
        %v711 = vpack.c.bf16 %v703, %v703
        %vm712 = vcmask 519168
        %713 = vst.msk [vmem:[%s239] sm:$0xf] %vm712, %v704
        %714 = vst.msk [vmem:[%s239 + $0x4] sm:$0xf] %vm712, %v705
        %715 = vst.msk [vmem:[%s239 + $0x8] sm:$0xf] %vm712, %v706
        %716 = vst.msk [vmem:[%s239 + $0xc] sm:$0xf] %vm712, %v707
        %717 = vst.msk [vmem:[%s239 + $0x10] sm:$0xf] %vm712, %v708
        %718 = vst.msk [vmem:[%s239 + $0x14] sm:$0xf] %vm712, %v709
        %719 = vst.msk [vmem:[%s239 + $0x18] sm:$0xf] %vm712, %v710
        %720 = vst.msk [vmem:[%s239 + $0x1c] sm:$0xf] %vm712, %v711
        %s721 = sand.u32 %s138, 1
        %s722 = scalar_lea.sflag [#allocation3], %s721
        %s723 = sand.u32 %s138, 1
        %s724 = smul.addr %s723, 32
        %s725 = scalar_lea.vmem [#allocation2], %s724
        // Predicated region
        $region37: #{downsampler_block.1} parent=35 // pred_check
          %p726 = pneg %p148
        $region38: #{downsampler_block.1} parent=35 // pred_check_branch
          %728 = sbr.rel (%p726) target = $region40
        $region39: #{downsampler_block.1} parent=35 // pred_region
          %s729 = smul.u32 8, %s23
          %731 = vsyncadd %s722, 0
          %s732 = smul.addr %s22, 8
          %s733 = sadd.s32 %s729, %s732
          %s734 = smul.addr %s733, 4
          %s735 = scalar_lea.hbm %s4, %s734
          %s736 = sshll.u32 %s725, 4
          %s737 = int_to_ptr.vmem [resolvable:$true] %s736
          %s738 = sshll.u32 %s735, 4
          %s739 = int_to_ptr.hbm [resolvable:$true] %s738
          %744 = dma.vmem_to_hbm [thread:$0]  %s737, 512, %s739, %s722, 64, 64, 4
        $region40: #{downsampler_block.1} parent=35 // pred_fallthru
          _
      $region36: #{downsampler_block.1} parent=5 // pred_fallthru
        _
      %p745 = scmp.le.s32.totalorder 2, %s13
      // Predicated region
      $region41: #{downsampler_block.1} parent=5 // pred_check
        %p746 = pneg %p745
      $region42: #{downsampler_block.1} parent=5 // pred_check_branch
        %748 = sbr.rel (%p746) target = $region44
      $region43: #{downsampler_block.1} parent=5 // pred_region
        %s749 = ssub.s32 %s13, 2
        // Predicated region
        $region45: #{downsampler_block.1} parent=43 // pred_check
          %p750 = pneg %p154
        $region46: #{downsampler_block.1} parent=43 // pred_check_branch
          %752 = sbr.rel (%p750) target = $region48
        $region47: #{downsampler_block.1} parent=43 // pred_region
          %s753 = sand.u32 %s139, 1
          %s754 = scalar_lea.sflag [#allocation3], %s753
          %s755 = sand.u32 %s139, 1
          %s756 = smul.addr %s755, 32
          %s757 = scalar_lea.vmem [#allocation2], %s756
          %759 = dma.done %s754, 512
        $region48: #{downsampler_block.1} parent=43 // pred_fallthru
          _
      $region44: #{downsampler_block.1} parent=5 // pred_fallthru
        _
    $region6: #{downsampler_block.1} parent=1 // loop_footer
      %s17 = sadd.s32 1, %s13
    $region7: #{downsampler_block.1} parent=1 // loop_footer_branch
      %12 = sbr.rel target = $region3
    $region8: #{downsampler_block.1} parent=1 // loop_exit
      _
    %760 = vsyncpa [#allocation3], 1
    %s761 = scalar_lea.sflag [#allocation3], 1
    %762 = vsyncpa %s761, 1

</llo_original>
